<compile_context>
chip_gen: v7x
topology: tpu7x:2x2x1
jax: 0.10.0
libtpu: 0.0.40
codegen_flags: <defaults>
</compile_context>

<pallas_src>
import jax
import jax.numpy as jnp
from jax.experimental import pallas as pl
from jax.experimental.pallas import tpu as pltpu  # noqa: F401  (TPU backend)


# ---------------------------------------------------------------------------
# Fused Pallas kernel: Linear(x1) and ReLU(x2) in one body, one lane-dense store
# ---------------------------------------------------------------------------
def _diverge_fused_kernel(x1_ref, w_ref, b_ref, x2_ref, o_ref):
    # Linear branch: (B, Din) @ (Din, Dout) on the MXU, f32 accumulation,
    # bias add on the VPU.
    lin = jnp.dot(x1_ref[...], w_ref[...], preferred_element_type=jnp.float32)
    lin = lin + b_ref[...]

    # ReLU branch: pure VPU elementwise (no zeros_like broadcast).
    relu = jnp.maximum(x2_ref[...], 0.0)

    # Pack both results into one (B, Dout + Drelu) = (B, 128) slab so the
    # output store is full-lane-width (unmasked vst) instead of two masked
    # 64-lane partial stores.
    o_ref[...] = jnp.concatenate(
        [lin.astype(o_ref.dtype), relu.astype(o_ref.dtype)], axis=-1
    )


def diverge_linear_relu(x1, w, b, x2):
    """Fused forward for Diverge([Linear(Din, Dout), ReLU()]).

    Returns [linear_out (B, Dout), relu_out (B, Drelu)].
    """
    B, Din = x1.shape
    Dout = w.shape[1]
    Drelu = x2.shape[1]

    out = pl.pallas_call(
        _diverge_fused_kernel,
        out_shape=jax.ShapeDtypeStruct((B, Dout + Drelu), x1.dtype),
        in_specs=[
            pl.BlockSpec((B, Din), lambda: (0, 0)),      # x1
            pl.BlockSpec((Din, Dout), lambda: (0, 0)),   # w
            pl.BlockSpec((1, Dout), lambda: (0, 0)),     # b
            pl.BlockSpec((B, Drelu), lambda: (0, 0)),    # x2
        ],
        out_specs=pl.BlockSpec((B, Dout + Drelu), lambda: (0, 0)),
    )(x1, w, b, x2)

    # Split the lane-dense slab back into the two Diverge outputs.
    return [out[:, :Dout], out[:, Dout:]]


# ---------------------------------------------------------------------------
# Diverge semantics: apply submodule i to input i
# (general fallback; the concrete [Linear, ReLU] instantiation uses the fused
#  kernel above to avoid per-submodule launch overhead)
# ---------------------------------------------------------------------------
def diverge(mods, xs):
    if len(xs) != len(mods):
        raise ValueError(
            f"Number of inputs {len(xs)} must equal number of modules {len(mods)}"
        )
    return [mod(x_i) for mod, x_i in zip(mods, xs)]


if __name__ == "__main__":
    key = jax.random.PRNGKey(0)
    k_x1, k_x2, k_w, k_b = jax.random.split(key, 4)

    batch = 8
    d_in, d_out = 32, 64
    d_relu = 64

    # Deterministic parameter init for the Linear submodule
    # (weight kept as (in, out) so the kernel computes x @ W + b directly).
    w = (jax.random.normal(k_w, (d_in, d_out), dtype=jnp.float32)
         * (1.0 / jnp.sqrt(d_in)))
    b = jax.random.normal(k_b, (1, d_out), dtype=jnp.float32) * 0.01

    # Example inputs, one per submodule.
    x1 = jax.random.normal(k_x1, (batch, d_in), dtype=jnp.float32)
    x2 = jax.random.normal(k_x2, (batch, d_relu), dtype=jnp.float32)

    # Fused Diverge forward: one pallas_call for both submodules.
    outs = diverge_linear_relu(x1, w, b, x2)
    outs = [jax.block_until_ready(o) for o in outs]

    # Reference check (plain JAX) for correctness.
    ref0 = x1 @ w + b
    ref1 = jnp.maximum(x2, 0.0)
    assert outs[0].shape == ref0.shape and outs[1].shape == ref1.shape
    assert jnp.allclose(outs[0], ref0, atol=1e-5, rtol=1e-5)
    assert jnp.allclose(outs[1], ref1)

    print("KERNEL_OK")
</pallas_src>

<mosaic_0001>
module attributes {stable_mosaic.version = 11 : i64} {
  func.func @_diverge_fused_kernel(%arg0: memref<8x32xf32, #tpu.memory_space<vmem>>, %arg1: memref<32x64xf32, #tpu.memory_space<vmem>>, %arg2: memref<1x64xf32, #tpu.memory_space<vmem>>, %arg3: memref<8x64xf32, #tpu.memory_space<vmem>>, %arg4: memref<8x128xf32, #tpu.memory_space<vmem>>) attributes {dimension_semantics = [], scalar_prefetch = 0 : i64, scratch_operands = 0 : i64, tpu.core_type = #tpu.core_type<tc>} {
    %c0 = arith.constant 0 : index
    %c0_0 = arith.constant 0 : index
    %0 = vector.load %arg0[%c0, %c0_0] : memref<8x32xf32, #tpu.memory_space<vmem>>, vector<8x32xf32>
    %c0_1 = arith.constant 0 : index
    %c0_2 = arith.constant 0 : index
    %1 = vector.load %arg1[%c0_1, %c0_2] : memref<32x64xf32, #tpu.memory_space<vmem>>, vector<32x64xf32>
    %cst = arith.constant dense<0.000000e+00> : vector<8x64xf32>
    %2 = tpu.matmul %0, %1, %cst {dimension_numbers = #tpu.dot_dimension_numbers<[1], [0], [0], [1], [0, 0, 1, 1], [], []>} : vector<8x32xf32>, vector<32x64xf32>, vector<8x64xf32> -> vector<8x64xf32>
    %c0_3 = arith.constant 0 : index
    %c0_4 = arith.constant 0 : index
    %3 = vector.load %arg2[%c0_3, %c0_4] : memref<1x64xf32, #tpu.memory_space<vmem>>, vector<1x64xf32>
    %4 = vector.broadcast %3 : vector<1x64xf32> to vector<8x64xf32>
    %5 = arith.addf %2, %4 : vector<8x64xf32>
    %c0_5 = arith.constant 0 : index
    %c0_6 = arith.constant 0 : index
    %6 = vector.load %arg3[%c0_5, %c0_6] : memref<8x64xf32, #tpu.memory_space<vmem>>, vector<8x64xf32>
    %cst_7 = arith.constant 0.000000e+00 : f32
    %7 = vector.broadcast %cst_7 : f32 to vector<8x64xf32>
    %8 = arith.maximumf %6, %7 : vector<8x64xf32>
    %9 = tpu.concatenate %5, %8 in 1 : vector<8x64xf32>, vector<8x64xf32> -> vector<8x128xf32>
    %c0_8 = arith.constant 0 : index
    %c0_9 = arith.constant 0 : index
    %10 = vector.load %arg4[%c0_8, %c0_9] : memref<8x128xf32, #tpu.memory_space<vmem>>, vector<8x128xf32>
    tpu.vector_store %arg4[%c0_8, %c0_9], %9 {strides = array<i32>} : memref<8x128xf32, #tpu.memory_space<vmem>>, vector<8x128xf32>,
    return
  }
}

</mosaic_0001>

<llo_original>
// kernel: tpu_custom_call.1
$region0: #{tpu_custom_call.1}
  #allocation0 [shape = 'u32[]', space=smem, size = 0x4, offset = 0x4, fixed_abs, tag = 'smem constant byte address 0x4 - core index']
  #allocation1 [shape = 'u32[144,128]{1,0:T(1,128)}', space=vmem, size = 0x12000, scoped, tag = 'internal scratch']
  %s0 = inlined_call_operand.hbm [shape: f32[8,32], index: 0, kind: input, shape index: {}]
  %s1 = inlined_call_operand.hbm [shape: f32[32,64], index: 1, kind: input, shape index: {}]
  %s2 = inlined_call_operand.vmem [shape: f32[1,64], index: 2, kind: input, shape index: {}]
  %s3 = inlined_call_operand.vmem [shape: f32[8,64], index: 3, kind: input, shape index: {}]
  %s4 = inlined_call_operand.hbm [shape: f32[8,128], index: 4, kind: output, shape index: {}]
  %s5 = sld [smem:[#allocation0]]
  $region34: #{tpu_custom_call.1} parent=0
    _
  %s7 = ssub.s32 1, %s5
  %s8 = scalar_select 0, %s7, %s5
  $region1: #{tpu_custom_call.1} parent=0
    #allocation2 [shape = 'u8[4096]{0}', space=vmem, size = 0x1000, scoped, tag = 'input window, operand 0, single buffered']
    #allocation3 [shape = 's32[1]{0}', space=sflag, size = 0x4, scoped, tag = 'scoped memory for tpu_custom_call.1']
    #allocation4 [shape = 's32[1]{0}', space=sflag, size = 0x4, scoped, tag = 'scoped memory for tpu_custom_call.1']
    #allocation5 [shape = 'u8[16384]{0}', space=vmem, size = 0x4000, scoped, tag = 'input window, operand 1, single buffered']
    #allocation6 [shape = 's32[1]{0}', space=sflag, size = 0x4, scoped, tag = 'scoped memory for tpu_custom_call.1']
    #allocation7 [shape = 'u8[4096]{0}', space=vmem, size = 0x1000, scoped, tag = 'output window, operand 0, single buffered']
    %9 = vsyncpa [#allocation3], 0
    %10 = vsyncpa [#allocation6], 0
    %11 = vsyncpa [#allocation4], 0
    // Predicated region
    $region2: #{tpu_custom_call.1} parent=1 // pred_check
      _
    $region3: #{tpu_custom_call.1} parent=1 // pred_check_branch
      %13 = sbr.rel (0) target = $region5
    $region4: #{tpu_custom_call.1} parent=1 // pred_region
      %s15 = ssub.s32 128, 128
      %16 = vsyncadd [#allocation3], %s15
      %s18 = sshll.u32 [#allocation2], 4
      %s19 = int_to_ptr.vmem [resolvable:$true] %s18
      %21 = dma.hbm_to_vmem [thread:$0]  %s0, 128, %s19, [#allocation3]
    $region5: #{tpu_custom_call.1} parent=1 // pred_fallthru
      _
    // Predicated region
    $region6: #{tpu_custom_call.1} parent=1 // pred_check
      _
    $region7: #{tpu_custom_call.1} parent=1 // pred_check_branch
      %23 = sbr.rel (0) target = $region9
    $region8: #{tpu_custom_call.1} parent=1 // pred_region
      %s25 = ssub.s32 512, 512
      %26 = vsyncadd [#allocation6], %s25
      %s27 = sshll.u32 [#allocation5], 4
      %s28 = int_to_ptr.vmem [resolvable:$true] %s27
      %33 = dma.hbm_to_vmem [thread:$0]  %s1, 512, %s28, [#allocation6], 128, 128, 8
    $region9: #{tpu_custom_call.1} parent=1 // pred_fallthru
      _
    // Predicated region
    $region10: #{tpu_custom_call.1} parent=1 // pred_check
      _
    $region11: #{tpu_custom_call.1} parent=1 // pred_check_branch
      %35 = sbr.rel (0) target = $region13
    $region12: #{tpu_custom_call.1} parent=1 // pred_region
      _
    $region13: #{tpu_custom_call.1} parent=1 // pred_fallthru
      _
    // Predicated region
    $region14: #{tpu_custom_call.1} parent=1 // pred_check
      _
    $region15: #{tpu_custom_call.1} parent=1 // pred_check_branch
      %37 = sbr.rel (0) target = $region17
    $region16: #{tpu_custom_call.1} parent=1 // pred_region
      _
    $region17: #{tpu_custom_call.1} parent=1 // pred_fallthru
      _
    // Predicated region
    $region18: #{tpu_custom_call.1} parent=1 // pred_check
      _
    $region19: #{tpu_custom_call.1} parent=1 // pred_check_branch
      %39 = sbr.rel (0) target = $region21
    $region20: #{tpu_custom_call.1} parent=1 // pred_region
      %40 = dma.done [#allocation3], 128
    $region21: #{tpu_custom_call.1} parent=1 // pred_fallthru
      _
    // Predicated region
    $region22: #{tpu_custom_call.1} parent=1 // pred_check
      _
    $region23: #{tpu_custom_call.1} parent=1 // pred_check_branch
      %42 = sbr.rel (0) target = $region25
    $region24: #{tpu_custom_call.1} parent=1 // pred_region
      %43 = dma.done [#allocation6], 512
    $region25: #{tpu_custom_call.1} parent=1 // pred_fallthru
      _
    %v44 = vld [vmem:[#allocation2] sm:$0xff]
    %v45 = vld [vmem:[#allocation5] sm:$0xff]
    %v46 = vld [vmem:[#allocation5 + $0x8] sm:$0xff]
    %v47 = vld [vmem:[#allocation5 + $0x10] sm:$0xff]
    %v48 = vld [vmem:[#allocation5 + $0x18] sm:$0xff]
    %v49 = vld [vmem:[%s2] sm:$0x1]
    %v51 = vlaneseq
    %v52 = vshrl.u32 %v51, 7
    %v53 = vsub.s32 0, %v52
    %v54 = vrot.slane %v49, %v53
    %vm56 = vcmask 261120
    %v58 = vsel %vm56, %v44, 0
    %60 = vmatprep.subr.mxu0 0.0
    %61 = vmatpush1.msra.mxu0 %v45
    %62 = vmatprep.subr.mxu0 0.0
    %63 = vmatpush1.msra.mxu0 %v46
    %64 = vmatprep.subr.mxu0 0.0
    %65 = vmatpush1.msra.mxu0 %v47
    %66 = vmatprep.subr.mxu0 0.0
    %67 = vmatpush1.msra.mxu0 %v48
    %68 = vmatprep.subr.mxu0 0.0
    %69 = vmatpush1.msra.mxu0 0.0
    %70 = vmatprep.subr.mxu0 0.0
    %71 = vmatpush1.msra.mxu0 0.0
    %72 = vmatprep.subr.mxu0 0.0
    %73 = vmatpush1.msra.mxu0 0.0
    %74 = vmatprep.subr.mxu0 0.0
    %75 = vmatpush1.msra.mxu0 0.0
    %76 = vmatprep.subr.mxu0 0.0
    %77 = vmatpush1.msra.mxu0 0.0
    %78 = vmatprep.subr.mxu0 0.0
    %79 = vmatpush1.msra.mxu0 0.0
    %80 = vmatprep.subr.mxu0 0.0
    %81 = vmatpush1.msra.mxu0 0.0
    %82 = vmatprep.subr.mxu0 0.0
    %83 = vmatpush1.msra.mxu0 0.0
    %84 = vmatprep.subr.mxu0 0.0
    %85 = vmatpush1.msra.mxu0 0.0
    %86 = vmatprep.subr.mxu0 0.0
    %87 = vmatpush1.msra.mxu0 0.0
    %88 = vmatprep.subr.mxu0 0.0
    %89 = vmatpush1.msra.mxu0 0.0
    %90 = vmatprep.subr.mxu0 0.0
    %91 = vmatpush1.msra.mxu0 0.0
    %92 = vmatprep.subr.mxu0 0.0
    %93 = vmatpush1.msra.mxu0 0.0
    %94 = vmatprep.subr.mxu0 0.0
    %95 = vmatpush1.msra.mxu0 0.0
    %96 = vmatprep.subr.mxu0 0.0
    %97 = vmatpush1.msra.mxu0 0.0
    %98 = vmatprep.subr.mxu0 0.0
    %99 = vmatpush1.msra.mxu0 0.0
    %100 = vmatprep.subr.mxu0 0.0
    %101 = vmatpush1.msra.mxu0 0.0
    %102 = vmatprep.subr.mxu0 0.0
    %103 = vmatpush1.msra.mxu0 0.0
    %104 = vmatprep.subr.mxu0 0.0
    %105 = vmatpush1.msra.mxu0 0.0
    %106 = vmatprep.subr.mxu0 0.0
    %107 = vmatpush1.msra.mxu0 0.0
    %108 = vmatprep.subr.mxu0 0.0
    %109 = vmatpush1.msra.mxu0 0.0
    %110 = vmatprep.subr.mxu0 0.0
    %111 = vmatpush1.msra.mxu0 0.0
    %112 = vmatprep.subr.mxu0 0.0
    %113 = vmatpush1.msra.mxu0 0.0
    %114 = vmatprep.subr.mxu0 0.0
    %115 = vmatpush1.msra.mxu0 0.0
    %116 = vmatprep.subr.mxu0 0.0
    %117 = vmatpush1.msra.mxu0 0.0
    %118 = vmatprep.subr.mxu0 0.0
    %119 = vmatpush1.msra.mxu0 0.0
    %120 = vmatprep.subr.mxu0 0.0
    %121 = vmatpush1.msra.mxu0 0.0
    %122 = vmatprep.subr.mxu0 0.0
    %123 = vmatpush1.msra.mxu0 0.0
    %124 = vmatprep.mubr.f32.mxu0 0.0
    %125 = vmatmul.mubr.f32.gmra.mrb[0].mxu0 %v58
    %v126 = vpop.f32.mrb[0].mxu0
    %v127 = vadd.f32 %v54, %v126
    %v128 = vpop.f32.mrb[0].mxu0
    %129 = vdwg.mxu0
    %v130 = vld [vmem:[%s3] sm:$0xff]
    %v131 = vmax.f32 %v130, 0.0
    %133 = vrot.lane.b32.xlu0 %v131, 64
    %v134 = vpop.permute.xlu0 %133
    %vm136 = vcmask 523264
    %v137 = vsel %vm136, %v127, %v134
    %138 = vst [vmem:[#allocation7] sm:$0xff] %v137
    // Predicated region
    $region26: #{tpu_custom_call.1} parent=1 // pred_check
      _
    $region27: #{tpu_custom_call.1} parent=1 // pred_check_branch
      %140 = sbr.rel (0) target = $region29
    $region28: #{tpu_custom_call.1} parent=1 // pred_region
      %s142 = ssub.s32 128, 128
      %143 = vsyncadd [#allocation4], %s142
      %s145 = sshll.u32 [#allocation7], 4
      %s146 = int_to_ptr.vmem [resolvable:$true] %s145
      %148 = dma.vmem_to_hbm [thread:$0]  %s146, 128, %s4, [#allocation4]
    $region29: #{tpu_custom_call.1} parent=1 // pred_fallthru
      _
    // Predicated region
    $region30: #{tpu_custom_call.1} parent=1 // pred_check
      _
    $region31: #{tpu_custom_call.1} parent=1 // pred_check_branch
      %150 = sbr.rel (0) target = $region33
    $region32: #{tpu_custom_call.1} parent=1 // pred_region
      %151 = dma.done [#allocation4], 128
    $region33: #{tpu_custom_call.1} parent=1 // pred_fallthru
      _
    %152 = vsyncpa [#allocation3], 1
    %153 = vsyncpa [#allocation6], 1
    %154 = vsyncpa [#allocation4], 1

</llo_original>
